<compile_context>
chip_gen: v7x
topology: tpu7x:2x2x1
jax: 0.10.0
libtpu: 0.0.40
codegen_flags: <defaults>
</compile_context>

<pallas_src>
import math
import functools

import jax
import jax.numpy as jnp
from jax import lax
from jax.experimental import pallas as pl
from jax.experimental.pallas import tpu as pltpu


def _default_vmem_limit() -> int:
    """~75% of physical VMEM (96 MiB on v5e/v6e, 48 MiB on v7x); conservative fallback."""
    try:
        cap = int(pltpu.get_tpu_info().vmem_capacity_bytes)
    except Exception:  # unknown backend / API drift -> conservative default
        cap = 64 * 1024 * 1024
    return max(int(cap * 0.75), 32 * 1024 * 1024)


def _pick_tile(n: int, cap: int, lane_pref: int = 128) -> int:
    """Largest tile <= cap dividing n, preferring multiples of `lane_pref`, then
    multiples of 8; falls back to the full dim."""
    if n <= cap:
        return n
    t = (cap // lane_pref) * lane_pref
    while t >= lane_pref:
        if n % t == 0:
            return t
        t -= lane_pref
    for t in range(cap, 7, -1):
        if n % t == 0 and t % 8 == 0:
            return t
    # TODO(synk): no padding/masking path for T with no nice divisor (e.g. prime T); this
    # falls back to the full dimension, which defeats the flash tiling for very large T.
    return n


# ---------------------------------------------------------------------------
# Kernels
# ---------------------------------------------------------------------------

def _qkv_proj_kernel(x_ref, w_ref, o_ref):
    # x_ref: (1, tp, C); w_ref: (C, 3C) resident in VMEM; o_ref: (1, tp, 3C) lane-dense.
    o_ref[0] = jnp.dot(x_ref[0], w_ref[...],
                       preferred_element_type=jnp.float32).astype(o_ref.dtype)


def _flash_proj_kernel(q_ref, k_ref, v_ref, w_ref, b_ref, o_ref,
                       m_ref, l_ref, acc_ref, oacc_ref, *, approx_reciprocal: bool):
    # q_ref: (1, tq, hs)   k_ref/v_ref: (1, tk, hs)
    # w_ref: (H, hs, C) resident   b_ref: (1, C) resident
    # o_ref: (1, tq, C)
    # scratch: m (tq,1), l (tq,1), acc (tq,hs), oacc (tq,C) — all f32, persistent.
    h = pl.program_id(2)
    ki = pl.program_id(3)
    nh = pl.num_programs(2)
    nk = pl.num_programs(3)

    @pl.when(jnp.logical_and(h == 0, ki == 0))
    def _init_out():
        oacc_ref[...] = jnp.zeros(oacc_ref.shape, dtype=oacc_ref.dtype)

    @pl.when(ki == 0)
    def _init_head():
        m_ref[...] = jnp.full(m_ref.shape, -jnp.inf, dtype=m_ref.dtype)
        l_ref[...] = jnp.zeros(l_ref.shape, dtype=l_ref.dtype)
        acc_ref[...] = jnp.zeros(acc_ref.shape, dtype=acc_ref.dtype)

    # 1/sqrt(hs) is already folded into the q columns of the QKV weight (prep time).
    q = q_ref[0]                                                   # (tq, hs)
    k = k_ref[0]                                                   # (tk, hs)
    # s = q @ k^T via dot_general (contract last dims; no transposed copy of k).
    s = lax.dot_general(q, k, (((1,), (1,)), ((), ())),
                        preferred_element_type=jnp.float32)        # (tq, tk) f32

    m_prev = m_ref[...]
    m_new = jnp.maximum(m_prev, jnp.max(s, axis=-1, keepdims=True))
    alpha = jnp.exp(m_prev - m_new)                                # (tq, 1)
    p = jnp.exp(s - m_new)                                         # (tq, tk)

    l_ref[...] = alpha * l_ref[...] + jnp.sum(p, axis=-1, keepdims=True)
    acc_ref[...] = alpha * acc_ref[...] + jnp.dot(
        p.astype(v_ref.dtype), v_ref[0], preferred_element_type=jnp.float32)
    m_ref[...] = m_new

    @pl.when(ki == nk - 1)
    def _project_head():
        # Finalize this head's attention output and fold it straight into the output
        # projection: oacc += (softmax(qk^T) v) @ W_proj_head[h].
        inv_l = pl.reciprocal(l_ref[...], approx=approx_reciprocal)   # EUP when approx
        y_h = (acc_ref[...] * inv_l).astype(w_ref.dtype)              # (tq, hs)
        oacc_ref[...] += jnp.dot(y_h, w_ref[h],                       # dynamic head slab
                                 preferred_element_type=jnp.float32)  # (tq, C)

    @pl.when(jnp.logical_and(h == nh - 1, ki == nk - 1))
    def _finalize():
        o_ref[0] = (oacc_ref[...] + b_ref[...]).astype(o_ref.dtype)


# ---------------------------------------------------------------------------
# Weight prep (hoist to model-load time in real use)
# ---------------------------------------------------------------------------

def prepare_mha_weights(w_attn, w_proj, b_proj, *, n_head: int, param_dtype):
    """w_attn: (3C, C) [PyTorch layout]; w_proj: (C, C); b_proj: (C,)."""
    C = w_attn.shape[1]
    hs = C // n_head
    scale = 1.0 / math.sqrt(hs)
    w_attn_t = w_attn.T                                                    # (C, 3C)
    # Fold 1/sqrt(hs) into the q output columns (done once, weight-sized).
    w_attn_t = jnp.concatenate([w_attn_t[:, :C] * scale, w_attn_t[:, C:]],
                               axis=1).astype(param_dtype)
    w_proj_heads = w_proj.T.reshape(n_head, hs, C).astype(param_dtype)     # (H, hs, C)
    b_proj_2d = b_proj.reshape(1, C).astype(jnp.float32)
    return w_attn_t, w_proj_heads, b_proj_2d


# ---------------------------------------------------------------------------
# Wrapper
# ---------------------------------------------------------------------------

def multihead_attention_pallas(x, w_attn, w_proj, b_proj, *, n_head: int,
                               q_tile_cap: int = 512, kv_tile_cap: int = 256,
                               proj_tile_cap: int = 256,
                               approx_reciprocal: bool = False,
                               param_dtype=None, vmem_limit_bytes=None):
    """x: (B, T, C); w_attn: (3C, C) [PyTorch layout]; w_proj: (C, C); b_proj: (C,)."""
    B, T, C = x.shape
    assert C % n_head == 0
    hs = C // n_head
    out_dtype = x.dtype
    param_dtype = x.dtype if param_dtype is None else param_dtype
    if vmem_limit_bytes is None:
        vmem_limit_bytes = _default_vmem_limit()

    # TODO(synk): hoist prepare_mha_weights to model-load time so the transposes/reshapes
    # are not re-emitted by XLA on every forward call.
    w_attn_t, w_proj_heads, b_proj_2d = prepare_mha_weights(
        w_attn, w_proj, b_proj, n_head=n_head, param_dtype=param_dtype)

    xp = x.astype(param_dtype)

    tp = _pick_tile(T, proj_tile_cap)   # projection row tile
    tq = _pick_tile(T, q_tile_cap)      # flash query tile (big: K/V re-streamed per q-tile)
    tk = _pick_tile(T, kv_tile_cap)     # flash kv tile (prefers multiples of 128)
    n_p = T // tp
    nq = T // tq
    nk = T // tk

    # ---- 1) fused QKV projection: lane-dense (tp, 3C) tiles, weight resident in VMEM ----
    qkv = pl.pallas_call(
        _qkv_proj_kernel,
        out_shape=jax.ShapeDtypeStruct((B, T, 3 * C), param_dtype),
        grid_spec=pltpu.PrefetchScalarGridSpec(
            num_scalar_prefetch=0,
            grid=(B, n_p),
            in_specs=[
                pl.BlockSpec((1, tp, C), lambda b, i: (b, i, 0)),
                pl.BlockSpec((C, 3 * C), lambda b, i: (0, 0)),      # resident weight
            ],
            out_specs=pl.BlockSpec((1, tp, 3 * C), lambda b, i: (b, i, 0)),
        ),
        compiler_params=pltpu.CompilerParams(
            dimension_semantics=("parallel", "parallel"),
            vmem_limit_bytes=vmem_limit_bytes,
        ),
    )(xp, w_attn_t)
    # TODO(synk): for very large C on v7x (64 MiB VMEM), tile the 3C axis and/or
    # single-buffer the resident weight to keep the double-buffered footprint in budget.

    # ---- 2+3+4) flash attention fused with the output projection ----
    if hs % 128 == 0:
        # Head split expressed directly in the BlockSpecs (lane-aligned): no XLA transpose.
        q_in, k_in, v_in = qkv, qkv, qkv
        q_spec = pl.BlockSpec((1, tq, hs), lambda b, qi, h, ki: (b, qi, h))
        k_spec = pl.BlockSpec((1, tk, hs), lambda b, qi, h, ki: (b, ki, n_head + h))
        v_spec = pl.BlockSpec((1, tk, hs), lambda b, qi, h, ki: (b, ki, 2 * n_head + h))
    else:
        # Sub-128-lane head blocks are illegal under the (8,128) rule; keep one XLA
        # reshape/transpose as layout glue.
        qkv_h = qkv.reshape(B, T, 3, n_head, hs).transpose(2, 0, 3, 1, 4)  # (3,B,H,T,hs)
        q_in, k_in, v_in = qkv_h[0], qkv_h[1], qkv_h[2]
        q_spec = pl.BlockSpec((1, None, tq, hs), lambda b, qi, h, ki: (b, h, qi, 0))
        k_spec = pl.BlockSpec((1, None, tk, hs), lambda b, qi, h, ki: (b, h, ki, 0))
        v_spec = pl.BlockSpec((1, None, tk, hs), lambda b, qi, h, ki: (b, h, ki, 0))

    flash = functools.partial(_flash_proj_kernel, approx_reciprocal=approx_reciprocal)
    out = pl.pallas_call(
        flash,
        out_shape=jax.ShapeDtypeStruct((B, T, C), out_dtype),
        grid_spec=pltpu.PrefetchScalarGridSpec(
            num_scalar_prefetch=0,
            grid=(B, nq, n_head, nk),
            in_specs=[
                q_spec, k_spec, v_spec,
                pl.BlockSpec((n_head, hs, C), lambda b, qi, h, ki: (0, 0, 0)),  # resident
                pl.BlockSpec((1, C), lambda b, qi, h, ki: (0, 0)),              # resident
            ],
            out_specs=pl.BlockSpec((1, tq, C), lambda b, qi, h, ki: (b, qi, 0)),
            scratch_shapes=[
                pltpu.VMEM((tq, 1), jnp.float32),    # running max  m
                pltpu.VMEM((tq, 1), jnp.float32),    # running sum  l
                pltpu.VMEM((tq, hs), jnp.float32),   # per-head attention accumulator
                pltpu.VMEM((tq, C), jnp.float32),    # projected-output accumulator
            ],
        ),
        compiler_params=pltpu.CompilerParams(
            dimension_semantics=("parallel", "parallel", "arbitrary", "arbitrary"),
            vmem_limit_bytes=vmem_limit_bytes,
        ),
    )(q_in, k_in, v_in, w_proj_heads, b_proj_2d)

    # TODO(synk): training-mode attention/residual dropout not implemented
    # (eval semantics: dropout_p = 0, resid_dropout = identity).
    return out


# ---------------------------------------------------------------------------
# Pure-JAX reference (mirrors the PyTorch forward in eval mode)
# ---------------------------------------------------------------------------

def multihead_attention_ref(x, w_attn, w_proj, b_proj, *, n_head: int):
    B, T, C = x.shape
    hs = C // n_head
    qkv = x @ w_attn.T                                  # (B, T, 3C)
    q, k, v = jnp.split(qkv, 3, axis=2)

    def split_heads(t):  # 'B T (nh hs) -> B nh T hs'
        return t.reshape(B, T, n_head, hs).transpose(0, 2, 1, 3)

    q, k, v = split_heads(q), split_heads(k), split_heads(v)
    s = jnp.einsum("bhqd,bhkd->bhqk", q, k) / math.sqrt(hs)
    p = jax.nn.softmax(s, axis=-1)
    y = jnp.einsum("bhqk,bhkd->bhqd", p, v)
    y = y.transpose(0, 2, 1, 3).reshape(B, T, C)
    return y @ w_proj.T + b_proj


# ---------------------------------------------------------------------------
# Test
# ---------------------------------------------------------------------------

if __name__ == "__main__":
    def _run(B, T, C, n_head, dtype=jnp.float32, **kw):
        key = jax.random.PRNGKey(0)
        kx, k1, k2, k3 = jax.random.split(key, 4)
        x = jax.random.normal(kx, (B, T, C), dtype=jnp.float32)
        bound = 1.0 / math.sqrt(C)   # PyTorch Linear init range
        w_attn = jax.random.uniform(k1, (3 * C, C), jnp.float32, -bound, bound)
        w_proj = jax.random.uniform(k2, (C, C), jnp.float32, -bound, bound)
        b_proj = jax.random.uniform(k3, (C,), jnp.float32, -bound, bound)
        out = multihead_attention_pallas(x.astype(dtype), w_attn, w_proj, b_proj,
                                         n_head=n_head, **kw)
        out = jax.block_until_ready(out)
        ref = multihead_attention_ref(x.astype(dtype).astype(jnp.float32),
                                      w_attn, w_proj, b_proj, n_head=n_head)
        return out, ref

    # 1) Small, module-consistent shapes (B=2, T=8, C=32, n_head=4): exact-math path.
    out, ref = _run(2, 8, 32, 4)
    assert out.shape == (2, 8, 32)
    assert jnp.allclose(out, ref, atol=1e-4, rtol=1e-4), "mismatch (small, exact)"

    # 2) hs=128 path: head split expressed purely in BlockSpecs (no XLA transpose),
    #    multiple kv tiles per head.
    out, ref = _run(2, 128, 256, 2, kv_tile_cap=64)
    assert out.shape == (2, 128, 256)
    assert jnp.allclose(out, ref, atol=2e-3, rtol=2e-3), "mismatch (hs=128 blockspec split)"

    # 3) Tiled path: multiple q-tiles, kv-tiles and head accumulation (hs=64).
    out, ref = _run(2, 256, 128, 2, q_tile_cap=128, kv_tile_cap=64)
    assert out.shape == (2, 256, 128)
    assert jnp.allclose(out, ref, atol=1e-3, rtol=1e-3), "mismatch (tiled, exact)"

    # 4) EUP approximate-reciprocal fast path (looser tolerance).
    out, ref = _run(2, 8, 32, 4, approx_reciprocal=True)
    assert jnp.allclose(out, ref, atol=5e-2, rtol=5e-2), "mismatch (small, approx)"

    # 5) bf16 inputs/params (v5e-style projection dtype), loose tolerance.
    out, ref = _run(2, 8, 32, 4, dtype=jnp.bfloat16)
    assert jnp.allclose(out.astype(jnp.float32), ref, atol=1e-1, rtol=1e-1), "mismatch (bf16)"

    print("KERNEL_OK")
</pallas_src>

<mosaic_0001>
module attributes {stable_mosaic.version = 11 : i64} {
  func.func @_qkv_proj_kernel(%arg0: i32, %arg1: i32, %arg2: memref<1x8x32xf32, #tpu.memory_space<vmem>>, %arg3: memref<32x96xf32, #tpu.memory_space<vmem>>, %arg4: memref<1x8x96xf32, #tpu.memory_space<vmem>>) attributes {dimension_semantics = [#tpu.dimension_semantics<parallel>, #tpu.dimension_semantics<parallel>], iteration_bounds = array<i64: 2, 1>, scalar_prefetch = 0 : i64, scratch_operands = 0 : i64, tpu.core_type = #tpu.core_type<tc>, window_params = [{transform_indices = @transform_0, window_bounds = array<i64: 1, 8, 32>}, {pipeline_mode = #tpu.pipeline_mode<synchronous>, transform_indices = @transform_1, window_bounds = array<i64: 32, 96>}, {transform_indices = @transform_2, window_bounds = array<i64: 1, 8, 96>}]} {
    %c0 = arith.constant 0 : index
    %c0_0 = arith.constant 0 : index
    %c0_1 = arith.constant 0 : index
    %0 = vector.load %arg2[%c0, %c0_0, %c0_1] : memref<1x8x32xf32, #tpu.memory_space<vmem>>, vector<1x8x32xf32>
    %1 = vector.shape_cast %0 : vector<1x8x32xf32> to vector<8x32xf32>
    %c0_2 = arith.constant 0 : index
    %c0_3 = arith.constant 0 : index
    %2 = vector.load %arg3[%c0_2, %c0_3] : memref<32x96xf32, #tpu.memory_space<vmem>>, vector<32x96xf32>
    %cst = arith.constant dense<0.000000e+00> : vector<8x96xf32>
    %3 = tpu.matmul %1, %2, %cst {dimension_numbers = #tpu.dot_dimension_numbers<[1], [0], [0], [1], [0, 0, 1, 1], [], []>} : vector<8x32xf32>, vector<32x96xf32>, vector<8x96xf32> -> vector<8x96xf32>
    %c0_4 = arith.constant 0 : index
    %c0_5 = arith.constant 0 : index
    %c0_6 = arith.constant 0 : index
    %4 = vector.load %arg4[%c0_4, %c0_5, %c0_6] : memref<1x8x96xf32, #tpu.memory_space<vmem>>, vector<1x8x96xf32>
    %5 = vector.shape_cast %4 : vector<1x8x96xf32> to vector<8x96xf32>
    %6 = vector.shape_cast %3 : vector<8x96xf32> to vector<1x8x96xf32>
    tpu.vector_store %arg4[%c0_4, %c0_5, %c0_6], %6 {strides = array<i32>} : memref<1x8x96xf32, #tpu.memory_space<vmem>>, vector<1x8x96xf32>,
    return
  }
  func.func @transform_0(%arg0: i32, %arg1: i32) -> (i32, i32, i32) {
    %c0_i32 = arith.constant 0 : i32
    %c0_i32_0 = arith.constant 0 : i32
    return %arg0, %arg1, %c0_i32 : i32, i32, i32
  }
  func.func @transform_1(%arg0: i32, %arg1: i32) -> (i32, i32) {
    %c0_i32 = arith.constant 0 : i32
    %c0_i32_0 = arith.constant 0 : i32
    %c0_i32_1 = arith.constant 0 : i32
    return %c0_i32, %c0_i32_0 : i32, i32
  }
  func.func @transform_2(%arg0: i32, %arg1: i32) -> (i32, i32, i32) {
    %c0_i32 = arith.constant 0 : i32
    %c0_i32_0 = arith.constant 0 : i32
    return %arg0, %arg1, %c0_i32 : i32, i32, i32
  }
}

</mosaic_0001>

<llo_original>
// kernel: tpu_custom_call.1
$region0: #{tpu_custom_call.1}
  #allocation0 [shape = 'u32[]', space=smem, size = 0x4, offset = 0x4, fixed_abs, tag = 'smem constant byte address 0x4 - core index']
  #allocation1 [shape = 'u32[144,128]{1,0:T(1,128)}', space=vmem, size = 0x12000, scoped, tag = 'internal scratch']
  %s0 = inlined_call_operand.hbm [shape: f32[2,8,32], index: 0, kind: input, shape index: {}]
  %s1 = inlined_call_operand.hbm [shape: f32[32,96], index: 1, kind: input, shape index: {}]
  %s2 = inlined_call_operand.hbm [shape: f32[2,8,96], index: 2, kind: output, shape index: {}]
  %s3 = sld [smem:[#allocation0]]
  $region49: #{tpu_custom_call.1} parent=0
    _
  %s5 = ssub.s32 1, %s3
  %s6 = scalar_select 0, %s5, %s3
  $region1: #{tpu_custom_call.1} parent=0
    #allocation2 [shape = 'u8[8192]{0}', space=vmem, size = 0x2000, scoped, tag = 'input window, operand 0']
    #allocation3 [shape = 's32[2]{0}', space=sflag, size = 0x8, scoped, tag = 'scoped memory for tpu_custom_call.1']
    #allocation4 [shape = 's32[2]{0}', space=sflag, size = 0x8, scoped, tag = 'scoped memory for tpu_custom_call.1']
    #allocation5 [shape = 'u8[16384]{0}', space=vmem, size = 0x4000, scoped, tag = 'input window, operand 1, single buffered']
    #allocation6 [shape = 's32[1]{0}', space=sflag, size = 0x4, scoped, tag = 'scoped memory for tpu_custom_call.1']
    #allocation7 [shape = 'u8[8192]{0}', space=vmem, size = 0x2000, scoped, tag = 'output window, operand 0']
    %7 = vsyncpa [#allocation3], 0
    %s8 = scalar_lea.sflag [#allocation3], 1
    %9 = vsyncpa %s8, 0
    %10 = vsyncpa [#allocation6], 0
    %11 = vsyncpa [#allocation4], 0
    %s12 = scalar_lea.sflag [#allocation4], 1
    %13 = vsyncpa %s12, 0
    loop: start=0, step=1, limit=4
    $region2: #{tpu_custom_call.1} parent=1 // loop_pre_header
      _
    $region3: #{tpu_custom_call.1} parent=1 // loop_header
      %s15 = sphi 0, %s19
      %p16 = scmp.ge.s32.totalorder %s15, 4
      %s22 = sphi 0, %s34
      %s23 = sphi 0, %s30
      %s24 = sphi 0, %s22
      %s25 = sphi 0, %s23
      %s26 = sphi 0, %s24
      %s27 = sphi 0, %s25
      %s39 = sphi 0, %s41
      %s42 = sphi 0, %s39
      %s43 = sphi 0, %s42
      %s59 = sphi 0, %s43
      %s63 = sphi 0, %s63
      %s65 = sphi 0, %s63
      %s66 = sphi 0, %s65
      %s80 = sphi 0, %s66
      %s88 = sphi 0, %s90
      %s91 = sphi 0, %s88
      %s92 = sphi 0, %s91
      %s108 = sphi 0, %s92
    $region4: #{tpu_custom_call.1} parent=1 // loop_header_branch
      %18 = sbr.rel (%p16) target = $region8
    $region5: #{tpu_custom_call.1} parent=1 // loop_body
      %s20 = ssub.s32 %s15, 1
      %s21 = ssub.s32 %s15, 2
      %s28 = sadd.s32 1, %s23
      %p29 = scmp.ge.s32.totalorder %s28, 1
      %s30 = scalar_select %p29, 0, %s28
      %s31 = sadd.s32 1, %s22
      %s32 = scalar_select %p29, %s31, %s22
      %p33 = scmp.ge.s32.totalorder %s32, 2
      %s34 = scalar_select %p33, 0, %s32
      %s35 = ssub.s32 %s22, %s34
      %s36 = ssub.s32 %s23, %s30
      %s37 = sor.u32 %s35, %s36
      %p38 = scmp.eq.s32.totalorder %s37, 0
      %s40 = sadd.s32 %s39, 1
      %s41 = scalar_select %p38, %s39, %s40
      %p44 = pneg %p38
      %p45 = scmp.eq.s32.totalorder %s15, 1
      %p46 = por %p44, %p45
      %p47 = scmp.ne.s32.totalorder %s39, %s42
      %p48 = scmp.eq.s32.totalorder %s15, 0
      %p49 = por %p47, %p48
      %p50 = scmp.ne.s32.totalorder %s39, %s42
      %p51 = scmp.eq.s32.totalorder %s20, 1
      %p52 = por %p50, %p51
      %p53 = scmp.ne.s32.totalorder %s42, %s43
      %p54 = scmp.eq.s32.totalorder %s20, 0
      %p55 = por %p53, %p54
      %p56 = scmp.ne.s32.totalorder %s42, %s43
      %p57 = scmp.eq.s32.totalorder %s21, 1
      %p58 = por %p56, %p57
      %p60 = scmp.ne.s32.totalorder %s43, %s59
      %p61 = scmp.eq.s32.totalorder %s21, 0
      %p62 = por %p60, %p61
      %s64 = sadd.s32 %s63, 1
      %p67 = scmp.eq.s32.totalorder %s15, 1
      %p68 = scmp.ne.s32.totalorder %s63, %s65
      %p69 = scmp.eq.s32.totalorder %s15, 0
      %p70 = por %p68, %p69
      %p71 = scmp.ne.s32.totalorder %s63, %s65
      %p72 = scmp.eq.s32.totalorder %s20, 1
      %p73 = por %p71, %p72
      %p74 = scmp.ne.s32.totalorder %s65, %s66
      %p75 = scmp.eq.s32.totalorder %s20, 0
      %p76 = por %p74, %p75
      %p77 = scmp.ne.s32.totalorder %s65, %s66
      %p78 = scmp.eq.s32.totalorder %s21, 1
      %p79 = por %p77, %p78
      %p81 = scmp.ne.s32.totalorder %s66, %s80
      %p82 = scmp.eq.s32.totalorder %s21, 0
      %p83 = por %p81, %p82
      %s84 = ssub.s32 %s22, %s34
      %s85 = ssub.s32 %s23, %s30
      %s86 = sor.u32 %s84, %s85
      %p87 = scmp.eq.s32.totalorder %s86, 0
      %s89 = sadd.s32 %s88, 1
      %s90 = scalar_select %p87, %s88, %s89
      %p93 = pneg %p87
      %p94 = scmp.eq.s32.totalorder %s15, 1
      %p95 = por %p93, %p94
      %p96 = scmp.ne.s32.totalorder %s88, %s91
      %p97 = scmp.eq.s32.totalorder %s15, 0
      %p98 = por %p96, %p97
      %p99 = scmp.ne.s32.totalorder %s88, %s91
      %p100 = scmp.eq.s32.totalorder %s20, 1
      %p101 = por %p99, %p100
      %p102 = scmp.ne.s32.totalorder %s91, %s92
      %p103 = scmp.eq.s32.totalorder %s20, 0
      %p104 = por %p102, %p103
      %p105 = scmp.ne.s32.totalorder %s91, %s92
      %p106 = scmp.eq.s32.totalorder %s21, 1
      %p107 = por %p105, %p106
      %p109 = scmp.ne.s32.totalorder %s92, %s108
      %p110 = scmp.eq.s32.totalorder %s21, 0
      %p111 = por %p109, %p110
      %p112 = scmp.le.s32.totalorder 1, %s15
      %p113 = scmp.lt.s32.totalorder %s15, 3
      %p114 = pnand %p112, %p113
      %p115 = pneg %p114
      // Predicated region
      $region9: #{tpu_custom_call.1} parent=5 // pred_check
        _
      $region10: #{tpu_custom_call.1} parent=5 // pred_check_branch
        %117 = sbr.rel (%p114) target = $region12
      $region11: #{tpu_custom_call.1} parent=5 // pred_region
        %s118 = ssub.s32 %s15, 1
        // Predicated region
        $region13: #{tpu_custom_call.1} parent=11 // pred_check
          %p119 = pneg %p76
        $region14: #{tpu_custom_call.1} parent=11 // pred_check_branch
          %121 = sbr.rel (%p119) target = $region16
        $region15: #{tpu_custom_call.1} parent=11 // pred_region
          %s123 = ssub.s32 512, 512
          %124 = vsyncadd [#allocation6], %s123
          %s125 = sshll.u32 [#allocation5], 4
          %s126 = int_to_ptr.vmem [resolvable:$true] %s125
          %131 = dma.hbm_to_vmem [thread:$0]  %s1, 512, %s126, [#allocation6], 128, 128, 8
        $region16: #{tpu_custom_call.1} parent=11 // pred_fallthru
          _
      $region12: #{tpu_custom_call.1} parent=5 // pred_fallthru
        _
      %p132 = scmp.lt.s32.totalorder %s15, 2
      // Predicated region
      $region17: #{tpu_custom_call.1} parent=5 // pred_check
        %p133 = pneg %p132
      $region18: #{tpu_custom_call.1} parent=5 // pred_check_branch
        %135 = sbr.rel (%p133) target = $region20
      $region19: #{tpu_custom_call.1} parent=5 // pred_region
        // Predicated region
        $region21: #{tpu_custom_call.1} parent=19 // pred_check
          %p136 = pneg %p49
        $region22: #{tpu_custom_call.1} parent=19 // pred_check_branch
          %138 = sbr.rel (%p136) target = $region24
        $region23: #{tpu_custom_call.1} parent=19 // pred_region
          %s139 = sand.u32 %s39, 1
          %s140 = scalar_lea.sflag [#allocation3], %s139
          %s141 = sand.u32 %s39, 1
          %s142 = smul.addr %s141, 8
          %s143 = scalar_lea.vmem [#allocation2], %s142
          %s145 = ssub.s32 128, 128
          %146 = vsyncadd %s140, %s145
          %s147 = sadd.s32 %s23, %s22
          %s148 = smul.addr %s147, 128
          %s149 = scalar_lea.hbm %s0, %s148
          %s151 = sshll.u32 %s143, 4
          %s152 = int_to_ptr.vmem [resolvable:$true] %s151
          %154 = dma.hbm_to_vmem [thread:$0]  %s149, 128, %s152, %s140
        $region24: #{tpu_custom_call.1} parent=19 // pred_fallthru
          _
      $region20: #{tpu_custom_call.1} parent=5 // pred_fallthru
        _
      %p155 = scmp.le.s32.totalorder 1, %s15
      %p156 = scmp.lt.s32.totalorder %s15, 3
      %p157 = pnand %p155, %p156
      %p158 = pneg %p157
      // Predicated region
      $region25: #{tpu_custom_call.1} parent=5 // pred_check
        _
      $region26: #{tpu_custom_call.1} parent=5 // pred_check_branch
        %160 = sbr.rel (%p157) target = $region28
      $region27: #{tpu_custom_call.1} parent=5 // pred_region
        %s161 = ssub.s32 %s15, 1
        %s162 = sand.u32 %s42, 1
        %s163 = scalar_lea.sflag [#allocation3], %s162
        %s164 = sand.u32 %s42, 1
        %s165 = smul.addr %s164, 8
        %s166 = scalar_lea.vmem [#allocation2], %s165
        // Predicated region
        $region29: #{tpu_custom_call.1} parent=27 // pred_check
          %p167 = pneg %p55
        $region30: #{tpu_custom_call.1} parent=27 // pred_check_branch
          %169 = sbr.rel (%p167) target = $region32
        $region31: #{tpu_custom_call.1} parent=27 // pred_region
          %170 = dma.done %s163, 128
        $region32: #{tpu_custom_call.1} parent=27 // pred_fallthru
          _
        // Predicated region
        $region33: #{tpu_custom_call.1} parent=27 // pred_check
          %p171 = pneg %p76
        $region34: #{tpu_custom_call.1} parent=27 // pred_check_branch
          %173 = sbr.rel (%p171) target = $region36
        $region35: #{tpu_custom_call.1} parent=27 // pred_region
          %174 = dma.done [#allocation6], 512
        $region36: #{tpu_custom_call.1} parent=27 // pred_fallthru
          _
        %s175 = sand.u32 %s42, 1
        %s176 = scalar_lea.sflag [#allocation3], %s175
        %s177 = sand.u32 %s42, 1
        %s178 = smul.addr %s177, 8
        %s179 = scalar_lea.vmem [#allocation2], %s178
        %p180 = pneg %p55
        %p181 = pneg %p52
        %p182 = pneg %p76
        %p183 = pneg %p73
        %p184 = pneg %p104
        %p185 = pneg %p101
        %s186 = sand.u32 %s91, 1
        %s187 = scalar_lea.sflag [#allocation4], %s186
        %s188 = sand.u32 %s91, 1
        %s189 = smul.addr %s188, 8
        %s190 = scalar_lea.vmem [#allocation7], %s189
        %v191 = vld [vmem:[%s166] sm:$0xff]
        %v192 = vld [vmem:[#allocation5] sm:$0xff]
        %v193 = vld [vmem:[#allocation5 + $0x8] sm:$0xff]
        %v194 = vld [vmem:[#allocation5 + $0x10] sm:$0xff]
        %v195 = vld [vmem:[#allocation5 + $0x18] sm:$0xff]
        %vm196 = vcmask 261120
        %v198 = vsel %vm196, %v191, 0
        %200 = vmatprep.subr.mxu0 0.0
        %201 = vmatpush1.msra.mxu0 %v192
        %202 = vmatprep.subr.mxu0 0.0
        %203 = vmatpush1.msra.mxu0 %v193
        %204 = vmatprep.subr.mxu0 0.0
        %205 = vmatpush1.msra.mxu0 %v194
        %206 = vmatprep.subr.mxu0 0.0
        %207 = vmatpush1.msra.mxu0 %v195
        %208 = vmatprep.subr.mxu0 0.0
        %209 = vmatpush1.msra.mxu0 0.0
        %210 = vmatprep.subr.mxu0 0.0
        %211 = vmatpush1.msra.mxu0 0.0
        %212 = vmatprep.subr.mxu0 0.0
        %213 = vmatpush1.msra.mxu0 0.0
        %214 = vmatprep.subr.mxu0 0.0
        %215 = vmatpush1.msra.mxu0 0.0
        %216 = vmatprep.subr.mxu0 0.0
        %217 = vmatpush1.msra.mxu0 0.0
        %218 = vmatprep.subr.mxu0 0.0
        %219 = vmatpush1.msra.mxu0 0.0
        %220 = vmatprep.subr.mxu0 0.0
        %221 = vmatpush1.msra.mxu0 0.0
        %222 = vmatprep.subr.mxu0 0.0
        %223 = vmatpush1.msra.mxu0 0.0
        %224 = vmatprep.subr.mxu0 0.0
        %225 = vmatpush1.msra.mxu0 0.0
        %226 = vmatprep.subr.mxu0 0.0
        %227 = vmatpush1.msra.mxu0 0.0
        %228 = vmatprep.subr.mxu0 0.0
        %229 = vmatpush1.msra.mxu0 0.0
        %230 = vmatprep.subr.mxu0 0.0
        %231 = vmatpush1.msra.mxu0 0.0
        %232 = vmatprep.subr.mxu0 0.0
        %233 = vmatpush1.msra.mxu0 0.0
        %234 = vmatprep.subr.mxu0 0.0
        %235 = vmatpush1.msra.mxu0 0.0
        %236 = vmatprep.subr.mxu0 0.0
        %237 = vmatpush1.msra.mxu0 0.0
        %238 = vmatprep.subr.mxu0 0.0
        %239 = vmatpush1.msra.mxu0 0.0
        %240 = vmatprep.subr.mxu0 0.0
        %241 = vmatpush1.msra.mxu0 0.0
        %242 = vmatprep.subr.mxu0 0.0
        %243 = vmatpush1.msra.mxu0 0.0
        %244 = vmatprep.subr.mxu0 0.0
        %245 = vmatpush1.msra.mxu0 0.0
        %246 = vmatprep.subr.mxu0 0.0
        %247 = vmatpush1.msra.mxu0 0.0
        %248 = vmatprep.subr.mxu0 0.0
        %249 = vmatpush1.msra.mxu0 0.0
        %250 = vmatprep.subr.mxu0 0.0
        %251 = vmatpush1.msra.mxu0 0.0
        %252 = vmatprep.subr.mxu0 0.0
        %253 = vmatpush1.msra.mxu0 0.0
        %254 = vmatprep.subr.mxu0 0.0
        %255 = vmatpush1.msra.mxu0 0.0
        %256 = vmatprep.subr.mxu0 0.0
        %257 = vmatpush1.msra.mxu0 0.0
        %258 = vmatprep.subr.mxu0 0.0
        %259 = vmatpush1.msra.mxu0 0.0
        %260 = vmatprep.subr.mxu0 0.0
        %261 = vmatpush1.msra.mxu0 0.0
        %262 = vmatprep.subr.mxu0 0.0
        %263 = vmatpush1.msra.mxu0 0.0
        %264 = vmatprep.mubr.f32.mxu0 0.0
        %265 = vmatmul.mubr.f32.gmra.mrb[0].mxu0 %v198
        %v266 = vpop.f32.mrb[0].mxu0
        %v267 = vadd.f32 0.0, %v266
        %v268 = vpop.f32.mrb[0].mxu0
        %269 = vdwg.mxu0
        %vm270 = vcmask 785408
        %271 = vst.msk [vmem:[%s190] sm:$0xff] %vm270, %v267
        %s272 = sand.u32 %s91, 1
        %s273 = scalar_lea.sflag [#allocation4], %s272
        %s274 = sand.u32 %s91, 1
        %s275 = smul.addr %s274, 8
        %s276 = scalar_lea.vmem [#allocation7], %s275
        // Predicated region
        $region37: #{tpu_custom_call.1} parent=27 // pred_check
          %p277 = pneg %p101
        $region38: #{tpu_custom_call.1} parent=27 // pred_check_branch
          %279 = sbr.rel (%p277) target = $region40
        $region39: #{tpu_custom_call.1} parent=27 // pred_region
          %s281 = ssub.s32 128, 128
          %282 = vsyncadd %s273, %s281
          %s283 = sadd.s32 %s25, %s24
          %s284 = smul.addr %s283, 128
          %s285 = scalar_lea.hbm %s2, %s284
          %s287 = sshll.u32 %s276, 4
          %s288 = int_to_ptr.vmem [resolvable:$true] %s287
          %290 = dma.vmem_to_hbm [thread:$0]  %s288, 128, %s285, %s273
        $region40: #{tpu_custom_call.1} parent=27 // pred_fallthru
          _
      $region28: #{tpu_custom_call.1} parent=5 // pred_fallthru
        _
      %p291 = scmp.le.s32.totalorder 2, %s15
      // Predicated region
      $region41: #{tpu_custom_call.1} parent=5 // pred_check
        %p292 = pneg %p291
      $region42: #{tpu_custom_call.1} parent=5 // pred_check_branch
        %294 = sbr.rel (%p292) target = $region44
      $region43: #{tpu_custom_call.1} parent=5 // pred_region
        %s295 = ssub.s32 %s15, 2
        // Predicated region
        $region45: #{tpu_custom_call.1} parent=43 // pred_check
          %p296 = pneg %p107
        $region46: #{tpu_custom_call.1} parent=43 // pred_check_branch
          %298 = sbr.rel (%p296) target = $region48
        $region47: #{tpu_custom_call.1} parent=43 // pred_region
          %s299 = sand.u32 %s92, 1
          %s300 = scalar_lea.sflag [#allocation4], %s299
          %s301 = sand.u32 %s92, 1
          %s302 = smul.addr %s301, 8
          %s303 = scalar_lea.vmem [#allocation7], %s302
          %304 = dma.done %s300, 128
        $region48: #{tpu_custom_call.1} parent=43 // pred_fallthru
          _
      $region44: #{tpu_custom_call.1} parent=5 // pred_fallthru
        _
    $region6: #{tpu_custom_call.1} parent=1 // loop_footer
      %s19 = sadd.s32 1, %s15
    $region7: #{tpu_custom_call.1} parent=1 // loop_footer_branch
      %14 = sbr.rel target = $region3
    $region8: #{tpu_custom_call.1} parent=1 // loop_exit
      _
    %305 = vsyncpa [#allocation3], 1
    %s306 = scalar_lea.sflag [#allocation3], 1
    %307 = vsyncpa %s306, 1
    %308 = vsyncpa [#allocation6], 1
    %309 = vsyncpa [#allocation4], 1
    %s310 = scalar_lea.sflag [#allocation4], 1
    %311 = vsyncpa %s310, 1

</llo_original>
